<compile_context>
chip_gen: v6e
topology: v6e:2x2x1
jax: 0.10.0
libtpu: 0.0.40
codegen_flags: <defaults>
</compile_context>

<pallas_src>
import functools

import jax
import jax.numpy as jnp
from jax.experimental import pallas as pl
from jax.experimental.pallas import tpu as pltpu


# Indices into the SMEM scalars vector.
_INV_PDE, _INV_BCS, _INV_ICS, _INV_DATA, _HAS_DATA = range(5)


# -----------------------------------------------------------------------------
# Fused Pallas kernel: 4x MLP forward + 4x mean-squared loss, scalars out in SMEM
# -----------------------------------------------------------------------------
def _fused_pinn_loss_kernel(scal_ref, b2_ref,
                            x_pde_ref, x_bcs_ref, x_ics_ref, x_data_ref,
                            u_data_ref, w1_ref, b1_ref, w2t_ref,
                            losses_ref):
    # Weights live in VMEM once for all four point sets.
    w1 = w1_ref[...]      # (D, H)
    b1 = b1_ref[...]      # (1, H)
    w2t = w2t_ref[...]    # (1, H)  == w2.T
    b2 = b2_ref[0]        # scalar from SMEM

    d_in = w1.shape[0]

    def mlp(x):  # (N, D) -> (N, 1), kept entirely in vregs / VMEM (never hits HBM)
        # Layer 1 as D broadcast-FMAs on the VPU (a K=D matmul would idle the MXU).
        h = jnp.broadcast_to(b1, (x.shape[0], b1.shape[1]))
        for d in range(d_in):  # static, unrolled at trace time (D is tiny)
            h = h + x[:, d:d + 1] * w1[d:d + 1, :]
        h = jnp.tanh(h)                                        # EUP
        # Layer 2 (H -> 1): elementwise multiply + lane reduction on the XLU.
        return jnp.sum(h * w2t, axis=-1, keepdims=True) + b2

    # ---- physics: residual = u(t, x) - sin(pi*x) * exp(-t) -------------------
    x_pde = x_pde_ref[...]
    src = jnp.sin(jnp.pi * x_pde[:, 1:2]) * jnp.exp(-x_pde[:, 0:1])   # EUP
    res = mlp(x_pde) - src
    losses_ref[0] = jnp.sum(res * res) * scal_ref[_INV_PDE]

    # ---- boundary: target = boundary_conditions(t_bcs) == 0 ------------------
    x_bcs = x_bcs_ref[...]
    d_bcs = mlp(x_bcs) - jnp.zeros_like(x_bcs[:, 0:1])
    losses_ref[1] = jnp.sum(d_bcs * d_bcs) * scal_ref[_INV_BCS]

    # ---- initial: target = sin(pi * x_ics[:, 1:2]) ----------------------------
    x_ics = x_ics_ref[...]
    d_ics = mlp(x_ics) - jnp.sin(jnp.pi * x_ics[:, 1:2])
    losses_ref[2] = jnp.sum(d_ics * d_ics) * scal_ref[_INV_ICS]

    # ---- data: masked to exactly 0 when no (x_data, u_data) is supplied ------
    d_dat = mlp(x_data_ref[...]) - u_data_ref[...]
    losses_ref[3] = (jnp.sum(d_dat * d_dat)
                     * scal_ref[_INV_DATA] * scal_ref[_HAS_DATA])


# -----------------------------------------------------------------------------
# Wrapper: single pallas_call for the whole loss forward
# -----------------------------------------------------------------------------
@functools.partial(jax.jit, static_argnames=("has_data",))
def fused_pinn_losses(x_pde, x_bcs, x_ics, x_data, u_data,
                      w1, b1, w2, b2, *, has_data):
    n_pde, n_bcs, n_ics, n_dat = (x_pde.shape[0], x_bcs.shape[0],
                                  x_ics.shape[0], x_data.shape[0])
    hidden = w1.shape[1]
    d_in = w1.shape[0]

    # Per-set 1/N factors + has-data mask (SMEM scalars; constants at trace time).
    scal = jnp.array([1.0 / n_pde, 1.0 / n_bcs, 1.0 / n_ics, 1.0 / n_dat,
                      1.0 if has_data else 0.0, 0.0, 0.0, 0.0], jnp.float32)
    b2s = jnp.reshape(b2, (1,)).astype(jnp.float32)
    w2t = jnp.reshape(w2, (1, hidden)).astype(jnp.float32)   # (H,1) -> (1,H)

    n_total = n_pde + n_bcs + n_ics + n_dat
    cost = pl.CostEstimate(
        flops=int(n_total * (4 * d_in * hidden + 4 * hidden + 8)),
        transcendentals=int(n_total * hidden + 2 * n_pde + n_ics),
        bytes_accessed=int(4 * (n_total * d_in + n_dat
                                + (d_in + 3) * hidden + 16)),
    )

    return pl.pallas_call(
        _fused_pinn_loss_kernel,
        out_shape=jax.ShapeDtypeStruct((4,), jnp.float32),
        in_specs=(
            [pl.BlockSpec(memory_space=pltpu.SMEM)] * 2       # scalars, b2
            + [pl.BlockSpec(memory_space=pltpu.VMEM)] * 8     # points + weights
        ),
        out_specs=pl.BlockSpec(memory_space=pltpu.SMEM),
        cost_estimate=cost,
    )(scal, b2s,
      x_pde.astype(jnp.float32), x_bcs.astype(jnp.float32),
      x_ics.astype(jnp.float32), x_data.astype(jnp.float32),
      u_data.astype(jnp.float32),
      w1.astype(jnp.float32), b1.astype(jnp.float32), w2t)


# -----------------------------------------------------------------------------
# Injected dependencies (abstract in the original module)
# -----------------------------------------------------------------------------
class PallasMLP:
    """u_model parameters (2 -> 32 -> 1). The Pallas forward runs inside the fused
    loss kernel; __call__ is the pure-JAX reference used only for verification."""

    def __init__(self, key, in_dim=2, hidden=32, out_dim=1):
        k1, k2 = jax.random.split(key)
        self.w1 = (jax.random.normal(k1, (in_dim, hidden), jnp.float32)
                   / jnp.sqrt(jnp.float32(in_dim)))
        self.b1 = jnp.zeros((1, hidden), jnp.float32)
        self.w2 = (jax.random.normal(k2, (hidden, out_dim), jnp.float32)
                   / jnp.sqrt(jnp.float32(hidden)))
        self.b2 = jnp.zeros((1, out_dim), jnp.float32)

    def __call__(self, x):  # pure-JAX reference forward
        return jnp.tanh(x @ self.w1 + self.b1) @ self.w2 + self.b2


class SyntheticEquation:
    """Injected `equation`. Its math is fused into the Pallas loss kernel; these
    methods are the pure-JAX reference used for the correctness check."""

    def residual_function(self, u_model, t, x):
        u = u_model(jnp.concatenate([t, x], axis=1))
        return u - jnp.sin(jnp.pi * x[:, 0:1]) * jnp.exp(-t)

    def boundary_conditions(self, t_bcs):
        return jnp.zeros_like(t_bcs)

    def initial_conditions(self, x_ics):
        return jnp.sin(jnp.pi * x_ics[:, 0:1])


# -----------------------------------------------------------------------------
# BasePINNLoss (Pallas version)
# -----------------------------------------------------------------------------
class BasePINNLossPallas:
    def __init__(self, equation, u_model):
        self.equation = equation
        self.u_model = u_model

    # --- per-loss helpers kept for API parity with the reference class -------
    # (the hot path, get_distinct_losses, computes all four inside ONE fused
    #  Pallas kernel and never calls these)
    def compute_physics_loss(self, residual):
        return jnp.mean(residual ** 2)

    def compute_boundary_loss(self, u_bcs, u_pred_bcs):
        return jnp.mean((u_pred_bcs - u_bcs) ** 2)

    def compute_initial_loss(self, u_ics, u_pred_ics):
        return jnp.mean((u_pred_ics - u_ics) ** 2)

    def compute_data_loss(self, u_data, u_pred_data):
        if u_pred_data is not None and u_data is not None:
            return jnp.mean((u_pred_data - u_data) ** 2)
        return jnp.float32(0.0)

    # --- fused path: one pallas_call for all four losses ----------------------
    def get_distinct_losses(self, x_pde, x_ics, x_bcs, x_data=None, u_data=None):
        has_data = x_data is not None and u_data is not None
        if not has_data:
            # 1-row placeholders; the kernel masks the data loss to exactly 0.
            x_data = jnp.zeros((1, x_pde.shape[1]), jnp.float32)
            u_data = jnp.zeros((1, 1), jnp.float32)

        m = self.u_model
        losses = fused_pinn_losses(
            x_pde, x_bcs, x_ics, x_data, u_data,
            m.w1, m.b1, m.w2, m.b2, has_data=has_data)
        return {
            "physics_loss": losses[0],
            "boundary_loss": losses[1],
            "initial_loss": losses[2],
            "data_loss": losses[3],
        }

    # concrete forward (abstract in the base class): sum of the four losses
    def forward(self, x_pde, x_ics, x_bcs, x_data=None, u_data=None):
        losses = self.get_distinct_losses(x_pde, x_ics, x_bcs, x_data, u_data)
        total = (losses["physics_loss"] + losses["boundary_loss"]
                 + losses["initial_loss"] + losses["data_loss"])
        return total, losses


# -----------------------------------------------------------------------------
# Main
# -----------------------------------------------------------------------------
if __name__ == "__main__":
    key = jax.random.PRNGKey(0)
    k_model, k_pde, k_ics, k_bcs, k_xd, k_ud = jax.random.split(key, 6)

    N = 8   # points per set
    D = 2   # (t, x)
    H = 32

    u_model = PallasMLP(k_model, in_dim=D, hidden=H, out_dim=1)
    equation = SyntheticEquation()
    loss_module = BasePINNLossPallas(equation, u_model)

    x_pde = jax.random.uniform(k_pde, (N, D), jnp.float32)
    x_ics = jax.random.uniform(k_ics, (N, D), jnp.float32)
    x_bcs = jax.random.uniform(k_bcs, (N, D), jnp.float32)
    x_data = jax.random.uniform(k_xd, (N, D), jnp.float32)
    u_data = jax.random.normal(k_ud, (N, 1), jnp.float32)

    total, losses = loss_module.forward(x_pde, x_ics, x_bcs, x_data, u_data)
    total = jax.block_until_ready(total)
    losses = {k: jax.block_until_ready(v) for k, v in losses.items()}

    # ---- pure-JAX reference for the whole get_distinct_losses ---------------
    t_pde, xs_pde = x_pde[:, 0:1], x_pde[:, 1:]
    ref_phys = jnp.mean(equation.residual_function(u_model, t_pde, xs_pde) ** 2)
    ref_bcs = jnp.mean((u_model(x_bcs)
                        - equation.boundary_conditions(x_bcs[:, 0:1])) ** 2)
    ref_ics = jnp.mean((u_model(x_ics)
                        - equation.initial_conditions(x_ics[:, 1:])) ** 2)
    ref_dat = jnp.mean((u_model(x_data) - u_data) ** 2)

    assert jnp.allclose(losses["physics_loss"], ref_phys, atol=1e-5, rtol=1e-5)
    assert jnp.allclose(losses["boundary_loss"], ref_bcs, atol=1e-5, rtol=1e-5)
    assert jnp.allclose(losses["initial_loss"], ref_ics, atol=1e-5, rtol=1e-5)
    assert jnp.allclose(losses["data_loss"], ref_dat, atol=1e-5, rtol=1e-5)
    assert jnp.allclose(total, ref_phys + ref_bcs + ref_ics + ref_dat,
                        atol=1e-5, rtol=1e-5)

    # ---- no-data path: data_loss must be exactly zero -----------------------
    total2, losses2 = loss_module.forward(x_pde, x_ics, x_bcs)
    total2 = jax.block_until_ready(total2)
    assert float(losses2["data_loss"]) == 0.0

    print("KERNEL_OK")
</pallas_src>

<mosaic_0001>
module attributes {stable_mosaic.version = 11 : i64} {
  func.func @_fused_pinn_loss_kernel(%arg0: memref<8xf32, #tpu.memory_space<smem>>, %arg1: memref<1xf32, #tpu.memory_space<smem>>, %arg2: memref<8x2xf32, #tpu.memory_space<vmem>>, %arg3: memref<8x2xf32, #tpu.memory_space<vmem>>, %arg4: memref<8x2xf32, #tpu.memory_space<vmem>>, %arg5: memref<8x2xf32, #tpu.memory_space<vmem>>, %arg6: memref<8x1xf32, #tpu.memory_space<vmem>>, %arg7: memref<2x32xf32, #tpu.memory_space<vmem>>, %arg8: memref<1x32xf32, #tpu.memory_space<vmem>>, %arg9: memref<1x32xf32, #tpu.memory_space<vmem>>, %arg10: memref<4xf32, #tpu.memory_space<smem>>) attributes {dimension_semantics = [], scalar_prefetch = 0 : i64, scratch_operands = 0 : i64, tpu.core_type = #tpu.core_type<tc>} {
    %c0 = arith.constant 0 : index
    %c0_0 = arith.constant 0 : index
    %0 = vector.load %arg7[%c0, %c0_0] : memref<2x32xf32, #tpu.memory_space<vmem>>, vector<2x32xf32>
    %c0_1 = arith.constant 0 : index
    %c0_2 = arith.constant 0 : index
    %1 = vector.load %arg8[%c0_1, %c0_2] : memref<1x32xf32, #tpu.memory_space<vmem>>, vector<1x32xf32>
    %c0_3 = arith.constant 0 : index
    %c0_4 = arith.constant 0 : index
    %2 = vector.load %arg9[%c0_3, %c0_4] : memref<1x32xf32, #tpu.memory_space<vmem>>, vector<1x32xf32>
    %c0_5 = arith.constant 0 : index
    %3 = memref.load %arg1[%c0_5] : memref<1xf32, #tpu.memory_space<smem>>
    %c0_6 = arith.constant 0 : index
    %c0_7 = arith.constant 0 : index
    %4 = vector.load %arg2[%c0_6, %c0_7] : memref<8x2xf32, #tpu.memory_space<vmem>>, vector<8x2xf32>
    %5 = vector.extract_strided_slice %4 {offsets = [0, 1], sizes = [8, 1], strides = [1, 1]} : vector<8x2xf32> to vector<8x1xf32>
    %cst = arith.constant 3.14159274 : f32
    %6 = vector.broadcast %cst : f32 to vector<8x1xf32>
    %7 = arith.mulf %6, %5 : vector<8x1xf32>
    %8 = math.sin %7 : vector<8x1xf32>
    %9 = vector.extract_strided_slice %4 {offsets = [0, 0], sizes = [8, 1], strides = [1, 1]} : vector<8x2xf32> to vector<8x1xf32>
    %cst_8 = arith.constant 0.000000e+00 : f32
    %10 = vector.broadcast %cst_8 : f32 to vector<8x1xf32>
    %11 = arith.subf %10, %9 : vector<8x1xf32>
    %12 = math.exp %11 : vector<8x1xf32>
    %13 = arith.mulf %8, %12 : vector<8x1xf32>
    %14 = vector.shape_cast %1 : vector<1x32xf32> to vector<1x32xf32>
    %15 = vector.broadcast %14 : vector<1x32xf32> to vector<8x32xf32>
    %16 = vector.extract_strided_slice %4 {offsets = [0, 0], sizes = [8, 1], strides = [1, 1]} : vector<8x2xf32> to vector<8x1xf32>
    %17 = vector.extract_strided_slice %0 {offsets = [0, 0], sizes = [1, 32], strides = [1, 1]} : vector<2x32xf32> to vector<1x32xf32>
    %18 = vector.broadcast %16 : vector<8x1xf32> to vector<8x32xf32>
    %19 = vector.broadcast %17 : vector<1x32xf32> to vector<8x32xf32>
    %20 = arith.mulf %18, %19 : vector<8x32xf32>
    %21 = arith.addf %15, %20 : vector<8x32xf32>
    %22 = vector.extract_strided_slice %4 {offsets = [0, 1], sizes = [8, 1], strides = [1, 1]} : vector<8x2xf32> to vector<8x1xf32>
    %23 = vector.extract_strided_slice %0 {offsets = [1, 0], sizes = [1, 32], strides = [1, 1]} : vector<2x32xf32> to vector<1x32xf32>
    %24 = vector.broadcast %22 : vector<8x1xf32> to vector<8x32xf32>
    %25 = vector.broadcast %23 : vector<1x32xf32> to vector<8x32xf32>
    %26 = arith.mulf %24, %25 : vector<8x32xf32>
    %27 = arith.addf %21, %26 : vector<8x32xf32>
    %28 = math.tanh %27 : vector<8x32xf32>
    %29 = vector.broadcast %2 : vector<1x32xf32> to vector<8x32xf32>
    %30 = arith.mulf %28, %29 : vector<8x32xf32>
    %cst_9 = arith.constant dense<0.000000e+00> : vector<8xf32>
    %31 = vector.multi_reduction <add>, %30, %cst_9 [1] : vector<8x32xf32> to vector<8xf32>
    %32 = vector.shape_cast %31 : vector<8xf32> to vector<8x1xf32>
    %33 = vector.broadcast %3 : f32 to vector<8x1xf32>
    %34 = arith.addf %32, %33 : vector<8x1xf32>
    %35 = arith.subf %34, %13 : vector<8x1xf32>
    %36 = arith.mulf %35, %35 : vector<8x1xf32>
    %37 = vector.shape_cast %36 : vector<8x1xf32> to vector<1x8x1xf32>
    %cst_10 = arith.constant dense<0.000000e+00> : vector<1xf32>
    %38 = vector.multi_reduction <add>, %37, %cst_10 [1, 2] : vector<1x8x1xf32> to vector<1xf32>
    %39 = vector.shape_cast %38 : vector<1xf32> to vector<1x1x1xf32>
    %40 = vector.extract %39[0, 0, 0] : f32 from vector<1x1x1xf32>
    %c0_11 = arith.constant 0 : index
    %41 = memref.load %arg0[%c0_11] : memref<8xf32, #tpu.memory_space<smem>>
    %42 = arith.mulf %40, %41 : f32
    %c0_12 = arith.constant 0 : index
    %43 = memref.load %arg10[%c0_12] : memref<4xf32, #tpu.memory_space<smem>>
    memref.store %42, %arg10[%c0_12] : memref<4xf32, #tpu.memory_space<smem>>
    %c0_13 = arith.constant 0 : index
    %c0_14 = arith.constant 0 : index
    %44 = vector.load %arg3[%c0_13, %c0_14] : memref<8x2xf32, #tpu.memory_space<vmem>>, vector<8x2xf32>
    %45 = vector.shape_cast %1 : vector<1x32xf32> to vector<1x32xf32>
    %46 = vector.broadcast %45 : vector<1x32xf32> to vector<8x32xf32>
    %47 = vector.extract_strided_slice %44 {offsets = [0, 0], sizes = [8, 1], strides = [1, 1]} : vector<8x2xf32> to vector<8x1xf32>
    %48 = vector.extract_strided_slice %0 {offsets = [0, 0], sizes = [1, 32], strides = [1, 1]} : vector<2x32xf32> to vector<1x32xf32>
    %49 = vector.broadcast %47 : vector<8x1xf32> to vector<8x32xf32>
    %50 = vector.broadcast %48 : vector<1x32xf32> to vector<8x32xf32>
    %51 = arith.mulf %49, %50 : vector<8x32xf32>
    %52 = arith.addf %46, %51 : vector<8x32xf32>
    %53 = vector.extract_strided_slice %44 {offsets = [0, 1], sizes = [8, 1], strides = [1, 1]} : vector<8x2xf32> to vector<8x1xf32>
    %54 = vector.extract_strided_slice %0 {offsets = [1, 0], sizes = [1, 32], strides = [1, 1]} : vector<2x32xf32> to vector<1x32xf32>
    %55 = vector.broadcast %53 : vector<8x1xf32> to vector<8x32xf32>
    %56 = vector.broadcast %54 : vector<1x32xf32> to vector<8x32xf32>
    %57 = arith.mulf %55, %56 : vector<8x32xf32>
    %58 = arith.addf %52, %57 : vector<8x32xf32>
    %59 = math.tanh %58 : vector<8x32xf32>
    %60 = vector.broadcast %2 : vector<1x32xf32> to vector<8x32xf32>
    %61 = arith.mulf %59, %60 : vector<8x32xf32>
    %cst_15 = arith.constant dense<0.000000e+00> : vector<8xf32>
    %62 = vector.multi_reduction <add>, %61, %cst_15 [1] : vector<8x32xf32> to vector<8xf32>
    %63 = vector.shape_cast %62 : vector<8xf32> to vector<8x1xf32>
    %64 = vector.broadcast %3 : f32 to vector<8x1xf32>
    %65 = arith.addf %63, %64 : vector<8x1xf32>
    %cst_16 = arith.constant 0.000000e+00 : f32
    %66 = vector.broadcast %cst_16 : f32 to vector<8x1xf32>
    %67 = arith.subf %65, %66 : vector<8x1xf32>
    %68 = arith.mulf %67, %67 : vector<8x1xf32>
    %69 = vector.shape_cast %68 : vector<8x1xf32> to vector<1x8x1xf32>
    %cst_17 = arith.constant dense<0.000000e+00> : vector<1xf32>
    %70 = vector.multi_reduction <add>, %69, %cst_17 [1, 2] : vector<1x8x1xf32> to vector<1xf32>
    %71 = vector.shape_cast %70 : vector<1xf32> to vector<1x1x1xf32>
    %72 = vector.extract %71[0, 0, 0] : f32 from vector<1x1x1xf32>
    %c1 = arith.constant 1 : index
    %73 = memref.load %arg0[%c1] : memref<8xf32, #tpu.memory_space<smem>>
    %74 = arith.mulf %72, %73 : f32
    %c1_18 = arith.constant 1 : index
    %75 = memref.load %arg10[%c1_18] : memref<4xf32, #tpu.memory_space<smem>>
    memref.store %74, %arg10[%c1_18] : memref<4xf32, #tpu.memory_space<smem>>
    %c0_19 = arith.constant 0 : index
    %c0_20 = arith.constant 0 : index
    %76 = vector.load %arg4[%c0_19, %c0_20] : memref<8x2xf32, #tpu.memory_space<vmem>>, vector<8x2xf32>
    %77 = vector.shape_cast %1 : vector<1x32xf32> to vector<1x32xf32>
    %78 = vector.broadcast %77 : vector<1x32xf32> to vector<8x32xf32>
    %79 = vector.extract_strided_slice %76 {offsets = [0, 0], sizes = [8, 1], strides = [1, 1]} : vector<8x2xf32> to vector<8x1xf32>
    %80 = vector.extract_strided_slice %0 {offsets = [0, 0], sizes = [1, 32], strides = [1, 1]} : vector<2x32xf32> to vector<1x32xf32>
    %81 = vector.broadcast %79 : vector<8x1xf32> to vector<8x32xf32>
    %82 = vector.broadcast %80 : vector<1x32xf32> to vector<8x32xf32>
    %83 = arith.mulf %81, %82 : vector<8x32xf32>
    %84 = arith.addf %78, %83 : vector<8x32xf32>
    %85 = vector.extract_strided_slice %76 {offsets = [0, 1], sizes = [8, 1], strides = [1, 1]} : vector<8x2xf32> to vector<8x1xf32>
    %86 = vector.extract_strided_slice %0 {offsets = [1, 0], sizes = [1, 32], strides = [1, 1]} : vector<2x32xf32> to vector<1x32xf32>
    %87 = vector.broadcast %85 : vector<8x1xf32> to vector<8x32xf32>
    %88 = vector.broadcast %86 : vector<1x32xf32> to vector<8x32xf32>
    %89 = arith.mulf %87, %88 : vector<8x32xf32>
    %90 = arith.addf %84, %89 : vector<8x32xf32>
    %91 = math.tanh %90 : vector<8x32xf32>
    %92 = vector.broadcast %2 : vector<1x32xf32> to vector<8x32xf32>
    %93 = arith.mulf %91, %92 : vector<8x32xf32>
    %cst_21 = arith.constant dense<0.000000e+00> : vector<8xf32>
    %94 = vector.multi_reduction <add>, %93, %cst_21 [1] : vector<8x32xf32> to vector<8xf32>
    %95 = vector.shape_cast %94 : vector<8xf32> to vector<8x1xf32>
    %96 = vector.broadcast %3 : f32 to vector<8x1xf32>
    %97 = arith.addf %95, %96 : vector<8x1xf32>
    %98 = vector.extract_strided_slice %76 {offsets = [0, 1], sizes = [8, 1], strides = [1, 1]} : vector<8x2xf32> to vector<8x1xf32>
    %cst_22 = arith.constant 3.14159274 : f32
    %99 = vector.broadcast %cst_22 : f32 to vector<8x1xf32>
    %100 = arith.mulf %99, %98 : vector<8x1xf32>
    %101 = math.sin %100 : vector<8x1xf32>
    %102 = arith.subf %97, %101 : vector<8x1xf32>
    %103 = arith.mulf %102, %102 : vector<8x1xf32>
    %104 = vector.shape_cast %103 : vector<8x1xf32> to vector<1x8x1xf32>
    %cst_23 = arith.constant dense<0.000000e+00> : vector<1xf32>
    %105 = vector.multi_reduction <add>, %104, %cst_23 [1, 2] : vector<1x8x1xf32> to vector<1xf32>
    %106 = vector.shape_cast %105 : vector<1xf32> to vector<1x1x1xf32>
    %107 = vector.extract %106[0, 0, 0] : f32 from vector<1x1x1xf32>
    %c2 = arith.constant 2 : index
    %108 = memref.load %arg0[%c2] : memref<8xf32, #tpu.memory_space<smem>>
    %109 = arith.mulf %107, %108 : f32
    %c2_24 = arith.constant 2 : index
    %110 = memref.load %arg10[%c2_24] : memref<4xf32, #tpu.memory_space<smem>>
    memref.store %109, %arg10[%c2_24] : memref<4xf32, #tpu.memory_space<smem>>
    %c0_25 = arith.constant 0 : index
    %c0_26 = arith.constant 0 : index
    %111 = vector.load %arg5[%c0_25, %c0_26] : memref<8x2xf32, #tpu.memory_space<vmem>>, vector<8x2xf32>
    %112 = vector.shape_cast %1 : vector<1x32xf32> to vector<1x32xf32>
    %113 = vector.broadcast %112 : vector<1x32xf32> to vector<8x32xf32>
    %114 = vector.extract_strided_slice %111 {offsets = [0, 0], sizes = [8, 1], strides = [1, 1]} : vector<8x2xf32> to vector<8x1xf32>
    %115 = vector.extract_strided_slice %0 {offsets = [0, 0], sizes = [1, 32], strides = [1, 1]} : vector<2x32xf32> to vector<1x32xf32>
    %116 = vector.broadcast %114 : vector<8x1xf32> to vector<8x32xf32>
    %117 = vector.broadcast %115 : vector<1x32xf32> to vector<8x32xf32>
    %118 = arith.mulf %116, %117 : vector<8x32xf32>
    %119 = arith.addf %113, %118 : vector<8x32xf32>
    %120 = vector.extract_strided_slice %111 {offsets = [0, 1], sizes = [8, 1], strides = [1, 1]} : vector<8x2xf32> to vector<8x1xf32>
    %121 = vector.extract_strided_slice %0 {offsets = [1, 0], sizes = [1, 32], strides = [1, 1]} : vector<2x32xf32> to vector<1x32xf32>
    %122 = vector.broadcast %120 : vector<8x1xf32> to vector<8x32xf32>
    %123 = vector.broadcast %121 : vector<1x32xf32> to vector<8x32xf32>
    %124 = arith.mulf %122, %123 : vector<8x32xf32>
    %125 = arith.addf %119, %124 : vector<8x32xf32>
    %126 = math.tanh %125 : vector<8x32xf32>
    %127 = vector.broadcast %2 : vector<1x32xf32> to vector<8x32xf32>
    %128 = arith.mulf %126, %127 : vector<8x32xf32>
    %cst_27 = arith.constant dense<0.000000e+00> : vector<8xf32>
    %129 = vector.multi_reduction <add>, %128, %cst_27 [1] : vector<8x32xf32> to vector<8xf32>
    %130 = vector.shape_cast %129 : vector<8xf32> to vector<8x1xf32>
    %131 = vector.broadcast %3 : f32 to vector<8x1xf32>
    %132 = arith.addf %130, %131 : vector<8x1xf32>
    %c0_28 = arith.constant 0 : index
    %c0_29 = arith.constant 0 : index
    %133 = vector.load %arg6[%c0_28, %c0_29] : memref<8x1xf32, #tpu.memory_space<vmem>>, vector<8x1xf32>
    %134 = arith.subf %132, %133 : vector<8x1xf32>
    %135 = arith.mulf %134, %134 : vector<8x1xf32>
    %136 = vector.shape_cast %135 : vector<8x1xf32> to vector<1x8x1xf32>
    %cst_30 = arith.constant dense<0.000000e+00> : vector<1xf32>
    %137 = vector.multi_reduction <add>, %136, %cst_30 [1, 2] : vector<1x8x1xf32> to vector<1xf32>
    %138 = vector.shape_cast %137 : vector<1xf32> to vector<1x1x1xf32>
    %139 = vector.extract %138[0, 0, 0] : f32 from vector<1x1x1xf32>
    %c3 = arith.constant 3 : index
    %140 = memref.load %arg0[%c3] : memref<8xf32, #tpu.memory_space<smem>>
    %141 = arith.mulf %139, %140 : f32
    %c4 = arith.constant 4 : index
    %142 = memref.load %arg0[%c4] : memref<8xf32, #tpu.memory_space<smem>>
    %143 = arith.mulf %141, %142 : f32
    %c3_31 = arith.constant 3 : index
    %144 = memref.load %arg10[%c3_31] : memref<4xf32, #tpu.memory_space<smem>>
    memref.store %143, %arg10[%c3_31] : memref<4xf32, #tpu.memory_space<smem>>
    return
  }
}

</mosaic_0001>

<llo_original>
// kernel: fused_pinn_losses.1
$region0: #{fused_pinn_losses.1}
  #allocation0 [shape = 'u32[]', space=smem, size = 0x4, offset = 0x4, fixed_abs, tag = 'smem constant byte address 0x4 - core index']
  #allocation1 [shape = 'u32[144,128]{1,0:T(1,128)}', space=vmem, size = 0x12000, scoped, tag = 'internal scratch']
  #allocation2 [shape = 'f32[1]{0:T(128)S(6)}', space=smem, size = 0x200, scoped, tag = 'scoped memory for fused_pinn_losses.1']
  %s0 = inlined_call_operand.vmem [shape: f32[8], index: 0, kind: input, shape index: {}]
  %s1 = inlined_call_operand.<no memory space> [shape: f32[1], index: 1, kind: input, shape index: {}]
  %s2 = inlined_call_operand.vmem [shape: f32[8,2], index: 2, kind: input, shape index: {}]
  %s3 = inlined_call_operand.vmem [shape: f32[8,2], index: 3, kind: input, shape index: {}]
  %s4 = inlined_call_operand.vmem [shape: f32[8,2], index: 4, kind: input, shape index: {}]
  %s5 = inlined_call_operand.vmem [shape: f32[8,2], index: 5, kind: input, shape index: {}]
  %s6 = inlined_call_operand.vmem [shape: f32[8,1], index: 6, kind: input, shape index: {}]
  %s7 = inlined_call_operand.vmem [shape: f32[2,32], index: 7, kind: input, shape index: {}]
  %s8 = inlined_call_operand.vmem [shape: f32[1,32], index: 8, kind: input, shape index: {}]
  %s9 = inlined_call_operand.vmem [shape: f32[1,32], index: 9, kind: input, shape index: {}]
  %s10 = inlined_call_operand.hbm [shape: f32[4], index: 10, kind: output, shape index: {}]
  %s11 = sld [smem:[#allocation0]]
  $region54: #{fused_pinn_losses.1} parent=0
    _
  %s13 = ssub.s32 1, %s11
  %s14 = scalar_select 0, %s13, %s11
  %15 = sst [smem:[#allocation2]] %s1
  $region1: #{fused_pinn_losses.1} parent=0
    #allocation3 [shape = 'u8[512]{0}', space=smem, size = 0x200, scoped, tag = 'input window, operand 0, single buffered']
    #allocation4 [shape = 's32[1]{0}', space=sflag, size = 0x4, scoped, tag = 'scoped memory for fused_pinn_losses.1']
    #allocation5 [shape = 's32[1]{0}', space=sflag, size = 0x4, scoped, tag = 'scoped memory for fused_pinn_losses.1']
    #allocation6 [shape = 'u8[512]{0}', space=smem, size = 0x200, scoped, tag = 'output window, operand 0, single buffered']
    %16 = vsyncpa [#allocation5], 0
    %17 = vsyncpa [#allocation4], 0
    // Predicated region
    $region2: #{fused_pinn_losses.1} parent=1 // pred_check
      _
    $region3: #{fused_pinn_losses.1} parent=1 // pred_check_branch
      %19 = sbr.rel (0) target = $region5
    $region4: #{fused_pinn_losses.1} parent=1 // pred_region
      %s21 = ssub.s32 16, 16
      %22 = vsyncadd [#allocation5], %s21
      %s24 = sshll.u32 %s0, 4
      %s25 = int_to_ptr.vmem [resolvable:$true] %s24
      %27 = dma.vmem_to_smem %s25, 16, [#allocation3], [#allocation5]
    $region5: #{fused_pinn_losses.1} parent=1 // pred_fallthru
      _
    // Predicated region
    $region6: #{fused_pinn_losses.1} parent=1 // pred_check
      _
    $region7: #{fused_pinn_losses.1} parent=1 // pred_check_branch
      %29 = sbr.rel (0) target = $region9
    $region8: #{fused_pinn_losses.1} parent=1 // pred_region
      _
    $region9: #{fused_pinn_losses.1} parent=1 // pred_fallthru
      _
    // Predicated region
    $region10: #{fused_pinn_losses.1} parent=1 // pred_check
      _
    $region11: #{fused_pinn_losses.1} parent=1 // pred_check_branch
      %31 = sbr.rel (0) target = $region13
    $region12: #{fused_pinn_losses.1} parent=1 // pred_region
      _
    $region13: #{fused_pinn_losses.1} parent=1 // pred_fallthru
      _
    // Predicated region
    $region14: #{fused_pinn_losses.1} parent=1 // pred_check
      _
    $region15: #{fused_pinn_losses.1} parent=1 // pred_check_branch
      %33 = sbr.rel (0) target = $region17
    $region16: #{fused_pinn_losses.1} parent=1 // pred_region
      _
    $region17: #{fused_pinn_losses.1} parent=1 // pred_fallthru
      _
    // Predicated region
    $region18: #{fused_pinn_losses.1} parent=1 // pred_check
      _
    $region19: #{fused_pinn_losses.1} parent=1 // pred_check_branch
      %35 = sbr.rel (0) target = $region21
    $region20: #{fused_pinn_losses.1} parent=1 // pred_region
      _
    $region21: #{fused_pinn_losses.1} parent=1 // pred_fallthru
      _
    // Predicated region
    $region22: #{fused_pinn_losses.1} parent=1 // pred_check
      _
    $region23: #{fused_pinn_losses.1} parent=1 // pred_check_branch
      %37 = sbr.rel (0) target = $region25
    $region24: #{fused_pinn_losses.1} parent=1 // pred_region
      _
    $region25: #{fused_pinn_losses.1} parent=1 // pred_fallthru
      _
    // Predicated region
    $region26: #{fused_pinn_losses.1} parent=1 // pred_check
      _
    $region27: #{fused_pinn_losses.1} parent=1 // pred_check_branch
      %39 = sbr.rel (0) target = $region29
    $region28: #{fused_pinn_losses.1} parent=1 // pred_region
      _
    $region29: #{fused_pinn_losses.1} parent=1 // pred_fallthru
      _
    // Predicated region
    $region30: #{fused_pinn_losses.1} parent=1 // pred_check
      _
    $region31: #{fused_pinn_losses.1} parent=1 // pred_check_branch
      %41 = sbr.rel (0) target = $region33
    $region32: #{fused_pinn_losses.1} parent=1 // pred_region
      _
    $region33: #{fused_pinn_losses.1} parent=1 // pred_fallthru
      _
    // Predicated region
    $region34: #{fused_pinn_losses.1} parent=1 // pred_check
      _
    $region35: #{fused_pinn_losses.1} parent=1 // pred_check_branch
      %43 = sbr.rel (0) target = $region37
    $region36: #{fused_pinn_losses.1} parent=1 // pred_region
      _
    $region37: #{fused_pinn_losses.1} parent=1 // pred_fallthru
      _
    // Predicated region
    $region38: #{fused_pinn_losses.1} parent=1 // pred_check
      _
    $region39: #{fused_pinn_losses.1} parent=1 // pred_check_branch
      %45 = sbr.rel (0) target = $region41
    $region40: #{fused_pinn_losses.1} parent=1 // pred_region
      _
    $region41: #{fused_pinn_losses.1} parent=1 // pred_fallthru
      _
    // Predicated region
    $region42: #{fused_pinn_losses.1} parent=1 // pred_check
      _
    $region43: #{fused_pinn_losses.1} parent=1 // pred_check_branch
      %47 = sbr.rel (0) target = $region45
    $region44: #{fused_pinn_losses.1} parent=1 // pred_region
      %48 = dma.done [#allocation5], 16
    $region45: #{fused_pinn_losses.1} parent=1 // pred_fallthru
      _
    %49 = sfence
    %v50 = vld [vmem:[%s7] sm:$0x3]
    %v51 = vld [vmem:[%s8] sm:$0x1]
    %v52 = vld [vmem:[%s9] sm:$0x1]
    %s53 = sld [smem:[#allocation2]]
    %v54 = vld [vmem:[%s2] sm:$0xff]
    %v55 = vmul.f32 %v54, 3.1415927
    %v56 = vand.u32 2147483647, %v55
    %vm57 = vcmp.le.f32.partialorder %v56, 0.7853982
    %vm58 = vcmp.lt.s32.totalorder %v55, 0
    %v59 = vand.u32 %v55, 2139095040
    %v60 = vshrl.u32 %v59, 23
    %v61 = vsub.s32 %v60, 127
    %v62 = vand.u32 2147483647, %v55
    %v63 = vand.u32 %v62, 8388607
    %v64 = vor.u32 %v63, 8388608
    %v65 = vsub.s32 0, %v64
    %v66 = vadd.s32 %v61, 1
    %vm67 = vcmp.gt.s32.totalorder %v66, 0
    %v68 = vsel %vm67, %v66, 0
    %v69 = vshrl.u32 %v68, 5
    %v70 = vand.u32 %v68, 31
    %v71 = vsub.s32 32, %v70
    %v72 = vshrl.u32 683565275, %v71
    %v73 = vshll.u32 683565275, %v70
    %v74 = vshrl.u32 2475754826, %v71
    %v75 = vor.u32 %v73, %v74
    %v76 = vshll.u32 2475754826, %v70
    %v77 = vshrl.u32 2131351028, %v71
    %v78 = vor.u32 %v76, %v77
    %v79 = vshll.u32 2131351028, %v70
    %v80 = vshrl.u32 2102212464, %v71
    %v81 = vor.u32 %v79, %v80
    %v82 = vshll.u32 2102212464, %v70
    %v83 = vshrl.u32 920167782, %v71
    %v84 = vor.u32 %v82, %v83
    %v85 = vshll.u32 920167782, %v70
    %v86 = vshrl.u32 1326507024, %v71
    %v87 = vor.u32 %v85, %v86
    %vm88 = vcmp.lt.s32.totalorder %v69, 1
    %vm89 = vcmp.lt.s32.totalorder %v69, 2
    %vm90 = vcmp.lt.s32.totalorder %v69, 3
    %vm91 = vcmp.lt.s32.totalorder %v69, 4
    %v92 = vsel %vm88, %v72, %v75
    %v93 = vsel %vm91, %v81, 2102212464
    %v94 = vsel %vm90, %v78, %v93
    %v95 = vsel %vm89, %v92, %v94
    %v96 = vsel %vm88, %v75, %v78
    %v97 = vsel %vm91, %v84, 920167782
    %v98 = vsel %vm90, %v81, %v97
    %v99 = vsel %vm89, %v96, %v98
    %v100 = vsel %vm88, %v78, %v81
    %v101 = vsel %vm91, %v87, 1326507024
    %v102 = vsel %vm90, %v84, %v101
    %v103 = vsel %vm89, %v100, %v102
    %v104 = vshll.u32 %v64, 8
    %v105 = vmul.u32.u64.compose %v104, %v103
    %v106 = vextract.low.u32 %v105
    %v107 = vextract.high.u32 %v105
    %v108 = vmul.u32.u64.compose %v104, %v99
    %v109 = vextract.low.u32 %v108
    %v110 = vextract.high.u32 %v108
    %v111 = vmul.u32 %v104, %v95
    %v112 = vadd.s32 %v107, %v109
    %vm113 = vc.u32 %v107, %v109
    %v114 = vadd.s32 %v110, 1
    %v115 = vsel %vm113, %v114, %v110
    %v116 = vadd.s32 %v111, %v115
    %v117 = vadd.s32 %v116, 536870912
    %v118 = vshrl.u32 %v117, 30
    %v119 = vshll.u32 %v118, 30
    %v120 = vsub.s32 %v116, %v119
    %vm121 = vcmp.lt.s32.totalorder %v120, 0
    %v122 = vsub.s32 0, %v120
    %v123 = vsel %vm121, %v122, %v120
    %v124 = vclz %v123
    %v125 = vsub.s32 %v124, 2
    %vm126 = vcmp.gt.s32.totalorder 0, %v125
    %v127 = vsel %vm126, 0, %v125
    %v128 = vsub.s32 32, %v127
    %v129 = vshll.u32 %v120, %v127
    %v130 = vshrl.u32 %v112, %v128
    %v131 = vor.u32 %v129, %v130
    %v132 = vsub.s32 4294967266, %v127
    %v133 = vadd.s32 %v132, 127
    %v134 = vshll.u32 %v133, 23
    %v135 = vor.u32 4788187, %v134
    %v136 = vand.u32 2147483647, %v135
    %v138 = vcvt.s32.f32 %v131
    %v139 = vmul.f32 %v138, %v136
    %v140 = vxor.u32 %v139, 2147483648
    %v141 = vsel %vm58, %v140, %v139
    %v142 = vsub.s32 4, %v118
    %v143 = vsel %vm58, %v142, %v118
    %v144 = vsel %vm57, %v55, %v141
    %v145 = vsel %vm57, 0, %v143
    %v146 = vcosq.f32.pop %v144
    %v147 = vsinq.f32.pop %v144
    %vm148 = vweird.f32 %v55
    %v149 = vadd.s32 %v145, 3
    %v150 = vand.u32 %v149, 3
    %vm151 = vcmp.lt.s32.totalorder %v150, 2
    %vm152 = vcmp.eq.s32.totalorder %v150, 0
    %v153 = vxor.u32 %v147, 2147483648
    %v154 = vsel %vm152, %v146, %v153
    %vm155 = vcmp.eq.s32.totalorder %v150, 2
    %v156 = vxor.u32 %v146, 2147483648
    %v157 = vsel %vm155, %v156, %v147
    %v158 = vsel %vm151, %v154, %v157
    %v159 = vsel %vm148, nan, %v158
    %v160 = vsub.f32 0.0, %v54
    %v161 = vmul.f32 %v160, 1.442695
    %v162 = vpow.pop %v161
    %164 = vrot.lane.b32.xlu0 %v162, 1
    %v165 = vpop.permute.xlu0 %164
    %v167 = vmul.f32 %v159, %v165
    %v169 = vlaneseq
    %v170 = vshrl.u32 %v169, 7
    %v171 = vsub.s32 0, %v170
    %v172 = vrot.slane %v51, %v171
    %175 = vset.pattern.permute.xlu0 0
    %176 = vperm.xlu0 %175, %v54
    %v177 = vpop.permute.xlu0 %176
    %v179 = vlaneseq
    %v180 = vshrl.u32 %v179, 7
    %v181 = vsub.s32 0, %v180
    %v182 = vrot.slane %v50, %v181
    %v183 = vmul.f32 %v177, %v182
    %v184 = vadd.f32 %v172, %v183
    %185 = vset.pattern.permute.xlu0 1
    %186 = vperm.xlu0 %185, %v54
    %v187 = vpop.permute.xlu0 %186
    %v189 = vlaneseq
    %v190 = vshrl.u32 %v189, 7
    %v191 = vsub.s32 1, %v190
    %v192 = vrot.slane %v50, %v191
    %v193 = vmul.f32 %v187, %v192
    %v194 = vadd.f32 %v184, %v193
    %v195 = vtanh.pop %v194
    %v197 = vlaneseq
    %v198 = vshrl.u32 %v197, 7
    %v199 = vsub.s32 0, %v198
    %v200 = vrot.slane %v52, %v199
    %v202 = vmul.f32 %v195, %v200
    %vm203 = vcmask 261120
    %v204 = vsel %vm203, %v202, 0.0
    %205 = vadd.xlane.f32.xlu0 %v204
    %v206 = vpop.xlane.xlu0 %205
    %v207 = vstv %s53
    %v208 = vadd.f32 %v206, %v207
    %v209 = vsub.f32 %v208, %v167
    %v210 = vmul.f32 %v209, %v209
    %212 = vrot.lane.b32.xlu0 %v210, 127
    %v213 = vpop.permute.xlu0 %212
    %vm215 = vcmask 7168
    %v216 = vsel %vm215, %v213, 0.0
    %217 = vadd.xlane.f32.xlu0 %v216
    %v218 = vpop.xlane.xlu0 %217
    %v219 = vrot.slane %v218, 4
    %v220 = vadd.f32 %v218, %v219
    %v221 = vrot.slane %v220, 2
    %v222 = vadd.f32 %v220, %v221
    %v223 = vrot.slane %v222, 1
    %v224 = vadd.f32 %v222, %v223
    %s225 = vtos %v224
    %s226 = sld [smem:[#allocation3]]
    %s227 = smul.f32 %s225, %s226
    %s228 = scalar_lea.smem [#allocation6], 0
    %229 = sst [smem:[%s228]] %s227
    %v230 = vld [vmem:[%s3] sm:$0xff]
    %232 = vset.pattern.permute.xlu0 0
    %233 = vperm.xlu0 %232, %v230
    %v234 = vpop.permute.xlu0 %233
    %v236 = vmul.f32 %v234, %v182
    %v237 = vadd.f32 %v172, %v236
    %238 = vset.pattern.permute.xlu0 1
    %239 = vperm.xlu0 %238, %v230
    %v240 = vpop.permute.xlu0 %239
    %v242 = vmul.f32 %v240, %v192
    %v243 = vadd.f32 %v237, %v242
    %v244 = vtanh.pop %v243
    %v245 = vmul.f32 %v244, %v200
    %v246 = vsel %vm203, %v245, 0.0
    %247 = vadd.xlane.f32.xlu0 %v246
    %v248 = vpop.xlane.xlu0 %247
    %v249 = vadd.f32 %v248, %v207
    %v250 = vmul.f32 %v249, %v249
    %v251 = vsel %vm215, %v250, 0.0
    %252 = vadd.xlane.f32.xlu0 %v251
    %v253 = vpop.xlane.xlu0 %252
    %v254 = vrot.slane %v253, 4
    %v255 = vadd.f32 %v253, %v254
    %v256 = vrot.slane %v255, 2
    %v257 = vadd.f32 %v255, %v256
    %v258 = vrot.slane %v257, 1
    %v259 = vadd.f32 %v257, %v258
    %s260 = vtos %v259
    %s261 = sld [smem:[#allocation3 + $0x1]]
    %s262 = smul.f32 %s260, %s261
    %s263 = scalar_lea.smem [#allocation6], 1
    %264 = sst [smem:[%s263]] %s262
    %v265 = vld [vmem:[%s4] sm:$0xff]
    %267 = vset.pattern.permute.xlu0 0
    %268 = vperm.xlu0 %267, %v265
    %v269 = vpop.permute.xlu0 %268
    %v271 = vmul.f32 %v269, %v182
    %v272 = vadd.f32 %v172, %v271
    %273 = vset.pattern.permute.xlu0 1
    %274 = vperm.xlu0 %273, %v265
    %v275 = vpop.permute.xlu0 %274
    %v277 = vmul.f32 %v275, %v192
    %v278 = vadd.f32 %v272, %v277
    %v279 = vtanh.pop %v278
    %v280 = vmul.f32 %v279, %v200
    %v281 = vsel %vm203, %v280, 0.0
    %282 = vadd.xlane.f32.xlu0 %v281
    %v283 = vpop.xlane.xlu0 %282
    %v284 = vadd.f32 %v283, %v207
    %v285 = vmul.f32 %v265, 3.1415927
    %v286 = vand.u32 2147483647, %v285
    %vm287 = vcmp.le.f32.partialorder %v286, 0.7853982
    %vm288 = vcmp.lt.s32.totalorder %v285, 0
    %v289 = vand.u32 %v285, 2139095040
    %v290 = vshrl.u32 %v289, 23
    %v291 = vsub.s32 %v290, 127
    %v292 = vand.u32 2147483647, %v285
    %v293 = vand.u32 %v292, 8388607
    %v294 = vor.u32 %v293, 8388608
    %v295 = vsub.s32 0, %v294
    %v296 = vadd.s32 %v291, 1
    %vm297 = vcmp.gt.s32.totalorder %v296, 0
    %v298 = vsel %vm297, %v296, 0
    %v299 = vshrl.u32 %v298, 5
    %v300 = vand.u32 %v298, 31
    %v301 = vsub.s32 32, %v300
    %v302 = vshrl.u32 683565275, %v301
    %v303 = vshll.u32 683565275, %v300
    %v304 = vshrl.u32 2475754826, %v301
    %v305 = vor.u32 %v303, %v304
    %v306 = vshll.u32 2475754826, %v300
    %v307 = vshrl.u32 2131351028, %v301
    %v308 = vor.u32 %v306, %v307
    %v309 = vshll.u32 2131351028, %v300
    %v310 = vshrl.u32 2102212464, %v301
    %v311 = vor.u32 %v309, %v310
    %v312 = vshll.u32 2102212464, %v300
    %v313 = vshrl.u32 920167782, %v301
    %v314 = vor.u32 %v312, %v313
    %v315 = vshll.u32 920167782, %v300
    %v316 = vshrl.u32 1326507024, %v301
    %v317 = vor.u32 %v315, %v316
    %vm318 = vcmp.lt.s32.totalorder %v299, 1
    %vm319 = vcmp.lt.s32.totalorder %v299, 2
    %vm320 = vcmp.lt.s32.totalorder %v299, 3
    %vm321 = vcmp.lt.s32.totalorder %v299, 4
    %v322 = vsel %vm318, %v302, %v305
    %v323 = vsel %vm321, %v311, 2102212464
    %v324 = vsel %vm320, %v308, %v323
    %v325 = vsel %vm319, %v322, %v324
    %v326 = vsel %vm318, %v305, %v308
    %v327 = vsel %vm321, %v314, 920167782
    %v328 = vsel %vm320, %v311, %v327
    %v329 = vsel %vm319, %v326, %v328
    %v330 = vsel %vm318, %v308, %v311
    %v331 = vsel %vm321, %v317, 1326507024
    %v332 = vsel %vm320, %v314, %v331
    %v333 = vsel %vm319, %v330, %v332
    %v334 = vshll.u32 %v294, 8
    %v335 = vmul.u32.u64.compose %v334, %v333
    %v336 = vextract.low.u32 %v335
    %v337 = vextract.high.u32 %v335
    %v338 = vmul.u32.u64.compose %v334, %v329
    %v339 = vextract.low.u32 %v338
    %v340 = vextract.high.u32 %v338
    %v341 = vmul.u32 %v334, %v325
    %v342 = vadd.s32 %v337, %v339
    %vm343 = vc.u32 %v337, %v339
    %v344 = vadd.s32 %v340, 1
    %v345 = vsel %vm343, %v344, %v340
    %v346 = vadd.s32 %v341, %v345
    %v347 = vadd.s32 %v346, 536870912
    %v348 = vshrl.u32 %v347, 30
    %v349 = vshll.u32 %v348, 30
    %v350 = vsub.s32 %v346, %v349
    %vm351 = vcmp.lt.s32.totalorder %v350, 0
    %v352 = vsub.s32 0, %v350
    %v353 = vsel %vm351, %v352, %v350
    %v354 = vclz %v353
    %v355 = vsub.s32 %v354, 2
    %vm356 = vcmp.gt.s32.totalorder 0, %v355
    %v357 = vsel %vm356, 0, %v355
    %v358 = vsub.s32 32, %v357
    %v359 = vshll.u32 %v350, %v357
    %v360 = vshrl.u32 %v342, %v358
    %v361 = vor.u32 %v359, %v360
    %v362 = vsub.s32 4294967266, %v357
    %v363 = vadd.s32 %v362, 127
    %v364 = vshll.u32 %v363, 23
    %v365 = vor.u32 4788187, %v364
    %v366 = vand.u32 2147483647, %v365
    %v368 = vcvt.s32.f32 %v361
    %v369 = vmul.f32 %v368, %v366
    %v370 = vxor.u32 %v369, 2147483648
    %v371 = vsel %vm288, %v370, %v369
    %v372 = vsub.s32 4, %v348
    %v373 = vsel %vm288, %v372, %v348
    %v374 = vsel %vm287, %v285, %v371
    %v375 = vsel %vm287, 0, %v373
    %v376 = vcosq.f32.pop %v374
    %v377 = vsinq.f32.pop %v374
    %vm378 = vweird.f32 %v285
    %v379 = vadd.s32 %v375, 3
    %v380 = vand.u32 %v379, 3
    %vm381 = vcmp.lt.s32.totalorder %v380, 2
    %vm382 = vcmp.eq.s32.totalorder %v380, 0
    %v383 = vxor.u32 %v377, 2147483648
    %v384 = vsel %vm382, %v376, %v383
    %vm385 = vcmp.eq.s32.totalorder %v380, 2
    %v386 = vxor.u32 %v376, 2147483648
    %v387 = vsel %vm385, %v386, %v377
    %v388 = vsel %vm381, %v384, %v387
    %v389 = vsel %vm378, nan, %v388
    %v390 = vsub.f32 %v284, %v389
    %v391 = vmul.f32 %v390, %v390
    %393 = vrot.lane.b32.xlu0 %v391, 127
    %v394 = vpop.permute.xlu0 %393
    %v396 = vsel %vm215, %v394, 0.0
    %397 = vadd.xlane.f32.xlu0 %v396
    %v398 = vpop.xlane.xlu0 %397
    %v399 = vrot.slane %v398, 4
    %v400 = vadd.f32 %v398, %v399
    %v401 = vrot.slane %v400, 2
    %v402 = vadd.f32 %v400, %v401
    %v403 = vrot.slane %v402, 1
    %v404 = vadd.f32 %v402, %v403
    %s405 = vtos %v404
    %s406 = sld [smem:[#allocation3 + $0x2]]
    %s407 = smul.f32 %s405, %s406
    %s408 = scalar_lea.smem [#allocation6], 2
    %409 = sst [smem:[%s408]] %s407
    %v410 = vld [vmem:[%s5] sm:$0xff]
    %412 = vset.pattern.permute.xlu0 0
    %413 = vperm.xlu0 %412, %v410
    %v414 = vpop.permute.xlu0 %413
    %v416 = vmul.f32 %v414, %v182
    %v417 = vadd.f32 %v172, %v416
    %418 = vset.pattern.permute.xlu0 1
    %419 = vperm.xlu0 %418, %v410
    %v420 = vpop.permute.xlu0 %419
    %v422 = vmul.f32 %v420, %v192
    %v423 = vadd.f32 %v417, %v422
    %v424 = vtanh.pop %v423
    %v425 = vmul.f32 %v424, %v200
    %v426 = vsel %vm203, %v425, 0.0
    %427 = vadd.xlane.f32.xlu0 %v426
    %v428 = vpop.xlane.xlu0 %427
    %v429 = vadd.f32 %v428, %v207
    %v430 = vld [vmem:[%s6] sm:$0xff]
    %v431 = vsub.f32 %v429, %v430
    %v432 = vmul.f32 %v431, %v431
    %v433 = vsel %vm215, %v432, 0.0
    %434 = vadd.xlane.f32.xlu0 %v433
    %v435 = vpop.xlane.xlu0 %434
    %v436 = vrot.slane %v435, 4
    %v437 = vadd.f32 %v435, %v436
    %v438 = vrot.slane %v437, 2
    %v439 = vadd.f32 %v437, %v438
    %v440 = vrot.slane %v439, 1
    %v441 = vadd.f32 %v439, %v440
    %s442 = vtos %v441
    %s443 = sld [smem:[#allocation3 + $0x3]]
    %s444 = smul.f32 %s442, %s443
    %s445 = sld [smem:[#allocation3 + $0x4]]
    %s446 = smul.f32 %s444, %s445
    %s447 = scalar_lea.smem [#allocation6], 3
    %448 = sst [smem:[%s447]] %s446
    // Predicated region
    $region46: #{fused_pinn_losses.1} parent=1 // pred_check
      _
    $region47: #{fused_pinn_losses.1} parent=1 // pred_check_branch
      %450 = sbr.rel (0) target = $region49
    $region48: #{fused_pinn_losses.1} parent=1 // pred_region
      %s452 = ssub.s32 16, 16
      %453 = vsyncadd [#allocation4], %s452
      %456 = dma.smem_to_hbm [#allocation6], 16, %s10, [#allocation4]
    $region49: #{fused_pinn_losses.1} parent=1 // pred_fallthru
      _
    // Predicated region
    $region50: #{fused_pinn_losses.1} parent=1 // pred_check
      _
    $region51: #{fused_pinn_losses.1} parent=1 // pred_check_branch
      %458 = sbr.rel (0) target = $region53
    $region52: #{fused_pinn_losses.1} parent=1 // pred_region
      %459 = dma.done [#allocation4], 16
    $region53: #{fused_pinn_losses.1} parent=1 // pred_fallthru
      _
    %460 = sfence
    %461 = vsyncpa [#allocation4], 1
    %462 = vsyncpa [#allocation5], 1

</llo_original>
